<compile_context>
chip_gen: v6e
topology: v6e:2x2x1
jax: 0.10.0
libtpu: 0.0.40
codegen_flags: <defaults>
</compile_context>

<pallas_src>
import math
import functools

import jax
import jax.numpy as jnp
from jax.experimental import pallas as pl
from jax.experimental.pallas import tpu as pltpu

# log((1 - 1e-5) / 1e-5): clip(sigmoid(l), 1e-5, 1-1e-5) == sigmoid(clip(l, +-L))
_LOGIT_CLAMP = 11.512915464920228


def _round_up(n, m):
    return ((n + m - 1) // m) * m


def _gumbel_layer_kernel(x_ref, w_ref, b_ref, u_ref, o_ref, *, inv_tau, training):
    # inner: Linear (MXU matmul) ; norm: Identity
    l = jnp.dot(x_ref[...], w_ref[...], preferred_element_type=jnp.float32)
    l = l + b_ref[...]

    # clamp in logit space (equivalent to clamping p = sigmoid(l) to [1e-5, 1-1e-5])
    l = jnp.clip(l, -_LOGIT_CLAMP, _LOGIT_CLAMP)

    # logit(u) = log(u) - log(1-u): a Logistic(0,1) sample == g1 - g2 for two
    # independent Gumbel samples, so one uniform draw per element suffices.
    u = u_ref[...]
    logistic = jnp.log(u) - jnp.log(1.0 - u)

    if training:
        # gumbel-sigmoid == y1 / (y1 + y2) of the original binary gumbel-softmax
        o = jax.nn.sigmoid((l + logistic) * inv_tau)
    else:
        # torch.bernoulli(p):  u < p  <=>  logit(u) < logit(p) = clamped l
        o = (logistic < l).astype(jnp.float32)

    o_ref[...] = o.astype(o_ref.dtype)


def gumbel_layer_forward(x, w, b, key, *, N=10, r=1e-3, time_step=0,
                         training=True, block_b=256):
    """Pallas implementation of _GumbelLayer.forward with a Linear inner.

    x: (B, Din) f32, w: (Din, Dout) f32 (pre-transposed), b: (1, Dout) f32.
    key: jax PRNG key for the noise draw (caller must advance it per call).
    Returns (B, Dout) float32 — matching the PyTorch `o.float()` return.
    """
    B, Din = x.shape
    Dout = w.shape[1]

    # self._tau() — host-side, identical formula; pass 1/tau into the kernel.
    tau = max(0.5, math.exp(-r * math.floor(time_step / N)))
    inv_tau = 1.0 / tau

    # Batch tile: multiple of 8 sublanes, as large as reasonable (<= 512).
    block_b = max(8, min(int(block_b), 512))
    block_b = min(block_b, _round_up(B, 8))
    block_b = _round_up(block_b, 8)
    Bp = _round_up(B, block_b)
    if Bp != B:
        x = jnp.pad(x, ((0, Bp - B), (0, 0)))

    # One uniform per output element, kept strictly inside (0, 1) so the logs
    # stay finite.  (Host-side jax.random: pltpu.prng_* has no interpret/CPU
    # lowering, and the torch module draws its noise with the framework RNG
    # anyway, so the consumed random stream differs but the distribution is
    # identical.)
    u = jax.random.uniform(key, (Bp, Dout), dtype=jnp.float32,
                           minval=1e-6, maxval=1.0 - 1e-6)

    kernel = functools.partial(_gumbel_layer_kernel,
                               inv_tau=float(inv_tau), training=training)

    out = pl.pallas_call(
        kernel,
        out_shape=jax.ShapeDtypeStruct((Bp, Dout), jnp.float32),
        grid=(Bp // block_b,),
        in_specs=[
            pl.BlockSpec((block_b, Din), lambda i: (i, 0)),    # x batch tile
            pl.BlockSpec((Din, Dout), lambda i: (0, 0)),       # weight (resident)
            pl.BlockSpec((1, Dout), lambda i: (0, 0)),         # bias   (resident)
            pl.BlockSpec((block_b, Dout), lambda i: (i, 0)),   # uniform noise tile
        ],
        out_specs=pl.BlockSpec((block_b, Dout), lambda i: (i, 0)),
        compiler_params=pltpu.CompilerParams(
            dimension_semantics=("parallel",)),
    )(x, w, b, u)

    return out[:B]


if __name__ == "__main__":
    key = jax.random.PRNGKey(0)
    B, Din, Dout = 16, 32, 128

    kx, kw, kb, kn1, kn2 = jax.random.split(key, 5)
    x = jax.random.normal(kx, (B, Din), dtype=jnp.float32)

    # deterministic Linear init (torch-default-style uniform bound 1/sqrt(fan_in))
    bound = 1.0 / math.sqrt(Din)
    w = jax.random.uniform(kw, (Din, Dout), dtype=jnp.float32,
                           minval=-bound, maxval=bound)
    b = jax.random.uniform(kb, (1, Dout), dtype=jnp.float32,
                           minval=-bound, maxval=bound)

    # training path (gumbel-softmax relaxation)
    out = gumbel_layer_forward(x, w, b, kn1, N=10, r=1e-3, time_step=0,
                               training=True)
    out = jax.block_until_ready(out)
    assert out.shape == (B, Dout) and out.dtype == jnp.float32
    assert bool(jnp.all(jnp.isfinite(out)))
    assert bool(jnp.all((out >= 0.0) & (out <= 1.0)))

    # eval path (bernoulli)
    out_eval = jax.block_until_ready(
        gumbel_layer_forward(x, w, b, kn2, training=False))
    assert out_eval.shape == (B, Dout)
    assert bool(jnp.all((out_eval == 0.0) | (out_eval == 1.0)))

    print("KERNEL_OK")
</pallas_src>

<mosaic_0001>
module attributes {stable_mosaic.version = 11 : i64} {
  func.func @_gumbel_layer_kernel(%arg0: i32, %arg1: memref<16x32xf32, #tpu.memory_space<vmem>>, %arg2: memref<32x128xf32, #tpu.memory_space<vmem>>, %arg3: memref<1x128xf32, #tpu.memory_space<vmem>>, %arg4: memref<16x128xf32, #tpu.memory_space<vmem>>, %arg5: memref<16x128xf32, #tpu.memory_space<vmem>>) attributes {dimension_semantics = [#tpu.dimension_semantics<parallel>], iteration_bounds = array<i64: 1>, scalar_prefetch = 0 : i64, scratch_operands = 0 : i64, tpu.core_type = #tpu.core_type<tc>, window_params = [{transform_indices = @transform_0, window_bounds = array<i64: 16, 32>}, {pipeline_mode = #tpu.pipeline_mode<synchronous>, transform_indices = @transform_1, window_bounds = array<i64: 32, 128>}, {pipeline_mode = #tpu.pipeline_mode<synchronous>, transform_indices = @transform_2, window_bounds = array<i64: 1, 128>}, {transform_indices = @transform_3, window_bounds = array<i64: 16, 128>}, {transform_indices = @transform_4, window_bounds = array<i64: 16, 128>}]} {
    %c0 = arith.constant 0 : index
    %c0_0 = arith.constant 0 : index
    %0 = vector.load %arg1[%c0, %c0_0] : memref<16x32xf32, #tpu.memory_space<vmem>>, vector<16x32xf32>
    %c0_1 = arith.constant 0 : index
    %c0_2 = arith.constant 0 : index
    %1 = vector.load %arg2[%c0_1, %c0_2] : memref<32x128xf32, #tpu.memory_space<vmem>>, vector<32x128xf32>
    %cst = arith.constant dense<0.000000e+00> : vector<16x128xf32>
    %2 = tpu.matmul %0, %1, %cst {dimension_numbers = #tpu.dot_dimension_numbers<[1], [0], [0], [1], [0, 0, 1, 1], [], []>} : vector<16x32xf32>, vector<32x128xf32>, vector<16x128xf32> -> vector<16x128xf32>
    %c0_3 = arith.constant 0 : index
    %c0_4 = arith.constant 0 : index
    %3 = vector.load %arg3[%c0_3, %c0_4] : memref<1x128xf32, #tpu.memory_space<vmem>>, vector<1x128xf32>
    %4 = vector.broadcast %3 : vector<1x128xf32> to vector<16x128xf32>
    %5 = arith.addf %2, %4 : vector<16x128xf32>
    %cst_5 = arith.constant -11.5129156 : f32
    %cst_6 = arith.constant 11.5129156 : f32
    %6 = vector.broadcast %cst_5 : f32 to vector<16x128xf32>
    %7 = arith.maximumf %6, %5 : vector<16x128xf32>
    %8 = vector.broadcast %cst_6 : f32 to vector<16x128xf32>
    %9 = arith.minimumf %8, %7 : vector<16x128xf32>
    %c0_7 = arith.constant 0 : index
    %c0_8 = arith.constant 0 : index
    %10 = vector.load %arg4[%c0_7, %c0_8] : memref<16x128xf32, #tpu.memory_space<vmem>>, vector<16x128xf32>
    %11 = math.log %10 : vector<16x128xf32>
    %cst_9 = arith.constant 1.000000e+00 : f32
    %12 = vector.broadcast %cst_9 : f32 to vector<16x128xf32>
    %13 = arith.subf %12, %10 : vector<16x128xf32>
    %14 = math.log %13 : vector<16x128xf32>
    %15 = arith.subf %11, %14 : vector<16x128xf32>
    %16 = arith.addf %9, %15 : vector<16x128xf32>
    %cst_10 = arith.constant 1.000000e+00 : f32
    %17 = vector.broadcast %cst_10 : f32 to vector<16x128xf32>
    %18 = arith.mulf %16, %17 : vector<16x128xf32>
    %19 = arith.negf %18 : vector<16x128xf32>
    %20 = math.exp %19 : vector<16x128xf32>
    %cst_11 = arith.constant 1.000000e+00 : f32
    %21 = vector.broadcast %cst_11 : f32 to vector<16x128xf32>
    %22 = arith.addf %21, %20 : vector<16x128xf32>
    %23 = arith.divf %21, %22 : vector<16x128xf32>
    %c0_12 = arith.constant 0 : index
    %c0_13 = arith.constant 0 : index
    %24 = vector.load %arg5[%c0_12, %c0_13] : memref<16x128xf32, #tpu.memory_space<vmem>>, vector<16x128xf32>
    tpu.vector_store %arg5[%c0_12, %c0_13], %23 {strides = array<i32>} : memref<16x128xf32, #tpu.memory_space<vmem>>, vector<16x128xf32>,
    return
  }
  func.func @transform_0(%arg0: i32) -> (i32, i32) {
    %c0_i32 = arith.constant 0 : i32
    %c0_i32_0 = arith.constant 0 : i32
    return %arg0, %c0_i32 : i32, i32
  }
  func.func @transform_1(%arg0: i32) -> (i32, i32) {
    %c0_i32 = arith.constant 0 : i32
    %c0_i32_0 = arith.constant 0 : i32
    %c0_i32_1 = arith.constant 0 : i32
    return %c0_i32, %c0_i32_0 : i32, i32
  }
  func.func @transform_2(%arg0: i32) -> (i32, i32) {
    %c0_i32 = arith.constant 0 : i32
    %c0_i32_0 = arith.constant 0 : i32
    %c0_i32_1 = arith.constant 0 : i32
    return %c0_i32, %c0_i32_0 : i32, i32
  }
  func.func @transform_3(%arg0: i32) -> (i32, i32) {
    %c0_i32 = arith.constant 0 : i32
    %c0_i32_0 = arith.constant 0 : i32
    return %arg0, %c0_i32 : i32, i32
  }
  func.func @transform_4(%arg0: i32) -> (i32, i32) {
    %c0_i32 = arith.constant 0 : i32
    %c0_i32_0 = arith.constant 0 : i32
    return %arg0, %c0_i32 : i32, i32
  }
}

</mosaic_0001>

<llo_original>
// kernel: tpu_custom_call.1
$region0: #{tpu_custom_call.1}
  #allocation0 [shape = 'u32[]', space=smem, size = 0x4, offset = 0x4, fixed_abs, tag = 'smem constant byte address 0x4 - core index']
  #allocation1 [shape = 'u32[144,128]{1,0:T(1,128)}', space=vmem, size = 0x12000, scoped, tag = 'internal scratch']
  %s0 = inlined_call_operand.hbm [shape: f32[16,32], index: 0, kind: input, shape index: {}]
  %s1 = inlined_call_operand.hbm [shape: f32[32,128], index: 1, kind: input, shape index: {}]
  %s2 = inlined_call_operand.vmem [shape: f32[1,128], index: 2, kind: input, shape index: {}]
  %s3 = inlined_call_operand.hbm [shape: f32[16,128], index: 3, kind: input, shape index: {}]
  %s4 = inlined_call_operand.hbm [shape: f32[16,128], index: 4, kind: output, shape index: {}]
  %s5 = sld [smem:[#allocation0]]
  $region38: #{tpu_custom_call.1} parent=0
    _
  %s7 = ssub.s32 1, %s5
  %s8 = scalar_select 0, %s7, %s5
  $region1: #{tpu_custom_call.1} parent=0
    #allocation2 [shape = 'u8[8192]{0}', space=vmem, size = 0x2000, scoped, tag = 'input window, operand 0, single buffered']
    #allocation3 [shape = 's32[1]{0}', space=sflag, size = 0x4, scoped, tag = 'scoped memory for tpu_custom_call.1']
    #allocation4 [shape = 's32[1]{0}', space=sflag, size = 0x4, scoped, tag = 'scoped memory for tpu_custom_call.1']
    #allocation5 [shape = 'u8[16384]{0}', space=vmem, size = 0x4000, scoped, tag = 'input window, operand 1, single buffered']
    #allocation6 [shape = 's32[1]{0}', space=sflag, size = 0x4, scoped, tag = 'scoped memory for tpu_custom_call.1']
    #allocation7 [shape = 'u8[8192]{0}', space=vmem, size = 0x2000, scoped, tag = 'input window, operand 3, single buffered']
    #allocation8 [shape = 'u8[8192]{0}', space=vmem, size = 0x2000, scoped, tag = 'output window, operand 0, single buffered']
    %9 = vsyncpa [#allocation3], 0
    %10 = vsyncpa [#allocation6], 0
    %11 = vsyncpa [#allocation4], 0
    // Predicated region
    $region2: #{tpu_custom_call.1} parent=1 // pred_check
      _
    $region3: #{tpu_custom_call.1} parent=1 // pred_check_branch
      %13 = sbr.rel (0) target = $region5
    $region4: #{tpu_custom_call.1} parent=1 // pred_region
      %s15 = ssub.s32 256, 256
      %16 = vsyncadd [#allocation3], %s15
      %s17 = sshll.u32 [#allocation2], 4
      %s18 = int_to_ptr.vmem [resolvable:$true] %s17
      %23 = dma.hbm_to_vmem [thread:$0]  %s0, 256, %s18, [#allocation3], 128, 128, 8
    $region5: #{tpu_custom_call.1} parent=1 // pred_fallthru
      _
    // Predicated region
    $region6: #{tpu_custom_call.1} parent=1 // pred_check
      _
    $region7: #{tpu_custom_call.1} parent=1 // pred_check_branch
      %25 = sbr.rel (0) target = $region9
    $region8: #{tpu_custom_call.1} parent=1 // pred_region
      %s27 = ssub.s32 512, 512
      %28 = vsyncadd [#allocation6], %s27
      %s29 = sshll.u32 [#allocation5], 4
      %s30 = int_to_ptr.vmem [resolvable:$true] %s29
      %35 = dma.hbm_to_vmem [thread:$0]  %s1, 512, %s30, [#allocation6], 128, 128, 8
    $region9: #{tpu_custom_call.1} parent=1 // pred_fallthru
      _
    // Predicated region
    $region10: #{tpu_custom_call.1} parent=1 // pred_check
      _
    $region11: #{tpu_custom_call.1} parent=1 // pred_check_branch
      %37 = sbr.rel (0) target = $region13
    $region12: #{tpu_custom_call.1} parent=1 // pred_region
      _
    $region13: #{tpu_custom_call.1} parent=1 // pred_fallthru
      _
    // Predicated region
    $region14: #{tpu_custom_call.1} parent=1 // pred_check
      _
    $region15: #{tpu_custom_call.1} parent=1 // pred_check_branch
      %39 = sbr.rel (0) target = $region17
    $region16: #{tpu_custom_call.1} parent=1 // pred_region
      %s41 = ssub.s32 256, 256
      %42 = vsyncadd [#allocation6], %s41
      %s43 = sshll.u32 [#allocation7], 4
      %s44 = int_to_ptr.vmem [resolvable:$true] %s43
      %49 = dma.hbm_to_vmem [thread:$0]  %s3, 256, %s44, [#allocation6], 128, 128, 8
    $region17: #{tpu_custom_call.1} parent=1 // pred_fallthru
      _
    // Predicated region
    $region18: #{tpu_custom_call.1} parent=1 // pred_check
      _
    $region19: #{tpu_custom_call.1} parent=1 // pred_check_branch
      %51 = sbr.rel (0) target = $region21
    $region20: #{tpu_custom_call.1} parent=1 // pred_region
      %52 = dma.done [#allocation3], 256
    $region21: #{tpu_custom_call.1} parent=1 // pred_fallthru
      _
    // Predicated region
    $region22: #{tpu_custom_call.1} parent=1 // pred_check
      _
    $region23: #{tpu_custom_call.1} parent=1 // pred_check_branch
      %54 = sbr.rel (0) target = $region25
    $region24: #{tpu_custom_call.1} parent=1 // pred_region
      %55 = dma.done [#allocation6], 512
    $region25: #{tpu_custom_call.1} parent=1 // pred_fallthru
      _
    // Predicated region
    $region26: #{tpu_custom_call.1} parent=1 // pred_check
      _
    $region27: #{tpu_custom_call.1} parent=1 // pred_check_branch
      %57 = sbr.rel (0) target = $region29
    $region28: #{tpu_custom_call.1} parent=1 // pred_region
      %58 = dma.done [#allocation6], 256
    $region29: #{tpu_custom_call.1} parent=1 // pred_fallthru
      _
    %v59 = vld [vmem:[#allocation2] sm:$0xff]
    %v60 = vld [vmem:[#allocation2 + $0x8] sm:$0xff]
    %v61 = vld [vmem:[#allocation5] sm:$0xff]
    %v62 = vld [vmem:[#allocation5 + $0x8] sm:$0xff]
    %v63 = vld [vmem:[#allocation5 + $0x10] sm:$0xff]
    %v64 = vld [vmem:[#allocation5 + $0x18] sm:$0xff]
    %v65 = vld [vmem:[%s2] sm:$0x1]
    %v67 = vlaneseq
    %v68 = vshrl.u32 %v67, 7
    %v69 = vsub.s32 0, %v68
    %v70 = vrot.slane %v65, %v69
    %vm72 = vcmask 261120
    %v74 = vsel %vm72, %v59, 0
    %v77 = vsel %vm72, %v60, 0
    %79 = vmatprep.subr.mxu0 0.0
    %80 = vmatpush1.msra.mxu0 0.0
    %81 = vmatprep.subr.mxu0 0.0
    %82 = vmatpush1.msra.mxu0 0.0
    %83 = vmatprep.subr.mxu0 0.0
    %84 = vmatpush1.msra.mxu0 0.0
    %85 = vmatprep.subr.mxu0 0.0
    %86 = vmatpush1.msra.mxu0 0.0
    %87 = vmatprep.subr.mxu0 0.0
    %88 = vmatpush1.msra.mxu0 0.0
    %89 = vmatprep.subr.mxu0 0.0
    %90 = vmatpush1.msra.mxu0 0.0
    %91 = vmatprep.subr.mxu0 0.0
    %92 = vmatpush1.msra.mxu0 0.0
    %93 = vmatprep.subr.mxu0 0.0
    %94 = vmatpush1.msra.mxu0 0.0
    %95 = vmatprep.subr.mxu0 0.0
    %96 = vmatpush1.msra.mxu0 0.0
    %97 = vmatprep.subr.mxu0 0.0
    %98 = vmatpush1.msra.mxu0 0.0
    %99 = vmatprep.subr.mxu0 0.0
    %100 = vmatpush1.msra.mxu0 0.0
    %101 = vmatprep.subr.mxu0 0.0
    %102 = vmatpush1.msra.mxu0 0.0
    %103 = vmatprep.subr.mxu0 0.0
    %104 = vmatpush1.msra.mxu0 %v64
    %105 = vmatprep.subr.mxu0 0.0
    %106 = vmatpush1.msra.mxu0 %v63
    %107 = vmatprep.subr.mxu0 0.0
    %108 = vmatpush1.msra.mxu0 %v62
    %109 = vmatprep.subr.mxu0 0.0
    %110 = vmatpush1.msra.mxu0 %v61
    %111 = vmatprep.subr.mxu0 0.0
    %112 = vmatpush2.msra.mxu0 0.0
    %113 = vmatprep.subr.mxu0 0.0
    %114 = vmatpush2.msra.mxu0 0.0
    %115 = vmatprep.subr.mxu0 0.0
    %116 = vmatpush2.msra.mxu0 0.0
    %117 = vmatprep.subr.mxu0 0.0
    %118 = vmatpush2.msra.mxu0 0.0
    %119 = vmatprep.subr.mxu0 0.0
    %120 = vmatpush2.msra.mxu0 0.0
    %121 = vmatprep.subr.mxu0 0.0
    %122 = vmatpush2.msra.mxu0 0.0
    %123 = vmatprep.subr.mxu0 0.0
    %124 = vmatpush2.msra.mxu0 0.0
    %125 = vmatprep.subr.mxu0 0.0
    %126 = vmatpush2.msra.mxu0 0.0
    %127 = vmatprep.subr.mxu0 0.0
    %128 = vmatpush2.msra.mxu0 0.0
    %129 = vmatprep.subr.mxu0 0.0
    %130 = vmatpush2.msra.mxu0 0.0
    %131 = vmatprep.subr.mxu0 0.0
    %132 = vmatpush2.msra.mxu0 0.0
    %133 = vmatprep.subr.mxu0 0.0
    %134 = vmatpush2.msra.mxu0 0.0
    %135 = vmatprep.subr.mxu0 0.0
    %136 = vmatpush2.msra.mxu0 0.0
    %137 = vmatprep.subr.mxu0 0.0
    %138 = vmatpush2.msra.mxu0 0.0
    %139 = vmatprep.subr.mxu0 0.0
    %140 = vmatpush2.msra.mxu0 0.0
    %141 = vmatprep.subr.mxu0 0.0
    %142 = vmatpush2.msra.mxu0 0.0
    %143 = vmatprep.mubr.f32.mxu0 0.0
    %144 = vmatmul.mubr.f32.gmra.mxu0 %v74
    %v145 = vpop.f32.mrf.mxu0
    %v146 = vadd.f32 %v70, %v145
    %v147 = vpop.f32.mrf.mxu0
    %148 = vmatprep.mubr.f32.mxu0 0.0
    %149 = vmatmul.mubr.f32.gmra.mxu0 %v77
    %v150 = vpop.f32.mrf.mxu0
    %v151 = vadd.f32 %v70, %v150
    %v152 = vpop.f32.mrf.mxu0
    %153 = vdwg.mxu0
    %v154 = vmax.f32 %v146, -11.512916
    %v155 = vmax.f32 %v151, -11.512916
    %v156 = vmin.f32 %v154, 11.512916
    %v157 = vmin.f32 %v155, 11.512916
    %v158 = vld [vmem:[#allocation7] sm:$0xff]
    %v159 = vld [vmem:[#allocation7 + $0x8] sm:$0xff]
    %v160 = vlog2.pop %v158
    %v161 = vmul.f32 %v160, 0.6931472
    %v162 = vlog2.pop %v159
    %v163 = vmul.f32 %v162, 0.6931472
    %v164 = vsub.f32 1.0, %v158
    %v165 = vsub.f32 1.0, %v159
    %v166 = vlog2.pop %v164
    %v167 = vmul.f32 %v166, 0.6931472
    %v168 = vlog2.pop %v165
    %v169 = vmul.f32 %v168, 0.6931472
    %v170 = vsub.f32 %v161, %v167
    %v171 = vsub.f32 %v163, %v169
    %v172 = vadd.f32 %v156, %v170
    %v173 = vadd.f32 %v157, %v171
    %v174 = vxor.u32 %v172, 2147483648
    %v175 = vxor.u32 %v173, 2147483648
    %v176 = vmul.f32 %v174, 1.442695
    %v177 = vpow.pop %v176
    %v178 = vmul.f32 %v175, 1.442695
    %v179 = vpow.pop %v178
    %v180 = vadd.f32 %v177, 1.0
    %v181 = vadd.f32 %v179, 1.0
    %v182 = vrcp.pop %v180
    %v183 = vmul.f32 1.0, %v182
    %v184 = vrcp.pop %v181
    %v185 = vmul.f32 1.0, %v184
    %186 = vst [vmem:[#allocation8] sm:$0xff] %v183
    %187 = vst [vmem:[#allocation8 + $0x8] sm:$0xff] %v185
    // Predicated region
    $region30: #{tpu_custom_call.1} parent=1 // pred_check
      _
    $region31: #{tpu_custom_call.1} parent=1 // pred_check_branch
      %189 = sbr.rel (0) target = $region33
    $region32: #{tpu_custom_call.1} parent=1 // pred_region
      %s191 = ssub.s32 256, 256
      %192 = vsyncadd [#allocation4], %s191
      %s193 = sshll.u32 [#allocation8], 4
      %s194 = int_to_ptr.vmem [resolvable:$true] %s193
      %199 = dma.vmem_to_hbm [thread:$0]  %s194, 256, %s4, [#allocation4], 128, 128, 8
    $region33: #{tpu_custom_call.1} parent=1 // pred_fallthru
      _
    // Predicated region
    $region34: #{tpu_custom_call.1} parent=1 // pred_check
      _
    $region35: #{tpu_custom_call.1} parent=1 // pred_check_branch
      %201 = sbr.rel (0) target = $region37
    $region36: #{tpu_custom_call.1} parent=1 // pred_region
      %202 = dma.done [#allocation4], 256
    $region37: #{tpu_custom_call.1} parent=1 // pred_fallthru
      _
    %203 = vsyncpa [#allocation3], 1
    %204 = vsyncpa [#allocation6], 1
    %205 = vsyncpa [#allocation4], 1

</llo_original>
